<compile_context>
chip_gen: v6e
topology: v6e:2x2x1
jax: 0.10.0
libtpu: 0.0.40
codegen_flags: <defaults>
</compile_context>

<pallas_src>
import jax
import jax.numpy as jnp
from jax.experimental import pallas as pl
from jax.experimental.pallas import tpu as pltpu


# ----------------------------- Path A: direct row gather -----------------------------

def _gather_bag_kernel(ids_ref, emb_row_ref, w_ref, out_ref, acc_ref):
    """Per-(bag, token) grid step.

    ids_ref    : (B*S,)     int32 SMEM -- scalar-prefetched ids (used only by index_maps)
    emb_row_ref: (1, 1, D)  VMEM       -- embedding row of token (b, s)
    w_ref      : (2, D) f32 VMEM       -- row 0 = fc1_w / S, row 1 = [bias, 0, ..., 0]
    out_ref    : (1, 1, 128) f32 VMEM  -- bag b's result broadcast over 128 lanes
    acc_ref    : (1, D) f32 VMEM       -- running sum of this bag's embedding rows
    """
    s = pl.program_id(1)

    @pl.when(s == 0)
    def _():
        acc_ref[...] = jnp.zeros_like(acc_ref)

    acc_ref[...] += emb_row_ref[0].astype(jnp.float32)

    @pl.when(s == pl.num_programs(1) - 1)
    def _():
        y = jnp.sum(acc_ref[...] * w_ref[0:1, :], axis=-1, keepdims=True)  # (1, 1)
        y = y + w_ref[1:2, 0:1]                                            # + bias
        out_ref[...] = jnp.broadcast_to(y.reshape(1, 1, 1), out_ref.shape)


def _forward_row_gather(input_words, emb_table, fc1_w, fc1_b):
    B, S = input_words.shape
    V, D = emb_table.shape

    ids = input_words.reshape(B * S).astype(jnp.int32)
    # Free (bitcast-style) reshape: keeps the per-row block (1, 1, D) tile-legal.
    emb3 = emb_table.reshape(V, 1, D)

    # Tiny per-call prep (weight only, never the table): fold 1/S, pack bias into row 1.
    w_row = fc1_w.astype(jnp.float32).reshape(1, D) / jnp.float32(S)
    b_row = jnp.zeros((1, D), jnp.float32).at[0, 0].set(fc1_b.astype(jnp.float32)[0])
    w_pack = jnp.concatenate([w_row, b_row], axis=0)  # (2, D)

    out = pl.pallas_call(
        _gather_bag_kernel,
        out_shape=jax.ShapeDtypeStruct((B, 1, 128), jnp.float32),
        grid_spec=pltpu.PrefetchScalarGridSpec(
            num_scalar_prefetch=1,
            grid=(B, S),
            in_specs=[
                # Data-dependent row gather: block index = token id (block size 1 row).
                pl.BlockSpec((1, 1, D), lambda b, s, tok: (tok[b * S + s], 0, 0)),
                pl.BlockSpec((2, D), lambda b, s, tok: (0, 0)),     # weight+bias: resident
            ],
            out_specs=pl.BlockSpec((1, 1, 128), lambda b, s, tok: (b, 0, 0)),
            scratch_shapes=[pltpu.VMEM((1, D), jnp.float32)],
        ),
        compiler_params=pltpu.CompilerParams(
            dimension_semantics=("parallel", "arbitrary")),
    )(ids, emb3, w_pack)

    return out[:, 0, 0]


# ----------------------------- Path B: vocab scoring --------------------------------

def _token_score_kernel(w_ref, emb_ref, out_ref):
    """Stage 1: scores for one vocab tile.

    w_ref  : (8, D)  VMEM -- row 0 = fc1_w / S (emb dtype), rows 1..7 zero (MXU-aligned M)
    emb_ref: (tv, D) VMEM -- one tile of the (unpadded) embedding table
    out_ref: (1, tv) f32 VMEM -- out[0, t] = emb_ref[t, :] . (w / S)
    """
    scores8 = jnp.einsum(
        "od,vd->ov", w_ref[...], emb_ref[...],
        preferred_element_type=jnp.float32,
        precision=jax.lax.Precision.HIGH,   # 3-pass f32 emulation; plenty for a 300-long dot
    )
    out_ref[...] = scores8[0:1, :]          # store only row 0 -> (1, tv), lane-dense


def _bag_sum_kernel(idx_ref, scores_ref, bias_ref, out_ref):
    """Stage 2: y[b] = sum_s scores[idx[b, s]] + bias   (1/S already folded into scores).

    idx_ref: (B*S,) int32 SMEM   scores_ref: (V,) f32 SMEM
    bias_ref: (1,)  f32   SMEM   out_ref   : (B,) f32 SMEM
    Invariant: all ids lie in [0, V) (no runtime bounds check on TPU).
    """
    n_bags = out_ref.shape[0]
    seq = idx_ref.shape[0] // n_bags
    bias = bias_ref[0]

    @pl.loop(0, n_bags)
    def _(b):
        base = b * seq

        def tok_body(s, acc):
            return acc + scores_ref[idx_ref[base + s]]   # scalar SMEM gathers

        acc = jax.lax.fori_loop(0, seq, tok_body, jnp.float32(0.0), unroll=min(seq, 8))
        out_ref[b] = acc + bias


def _forward_vocab_score(input_words, emb_table, fc1_w, fc1_b, vocab_tile):
    B, S = input_words.shape
    V, D = emb_table.shape

    # Vocab tile: full V if it fits, else a multiple of 128 (lane-dense score tiles,
    # sublane-aligned table tiles).  A partial last tile is fine: out-of-range scores are
    # computed from unspecified rows but their output positions are masked off, and valid
    # token ids (< V) never index them.
    if vocab_tile >= V:
        tv = V
    else:
        tv = max(128, (vocab_tile // 128) * 128)
        if tv >= V:
            tv = V
    nv = pl.cdiv(V, tv)

    # Tiny per-call prep (weight only): fold 1/S, pad to 8 rows.  The table is streamed
    # as-is (no per-call pad/cast copy); pass it pre-cast to bf16 to halve stage-1 HBM
    # traffic if the accuracy budget allows.
    w_dtype = emb_table.dtype if emb_table.dtype == jnp.bfloat16 else jnp.float32
    w_row = (fc1_w.astype(jnp.float32).reshape(1, D) / jnp.float32(S)).astype(w_dtype)
    w8 = jnp.pad(w_row, ((0, 7), (0, 0)))

    scores = pl.pallas_call(
        _token_score_kernel,
        out_shape=jax.ShapeDtypeStruct((1, V), jnp.float32),
        grid=(nv,),
        in_specs=[
            pl.BlockSpec((8, D), lambda v: (0, 0)),    # weight: resident
            pl.BlockSpec((tv, D), lambda v: (v, 0)),   # table tile: pipelined HBM->VMEM
        ],
        out_specs=pl.BlockSpec((1, tv), lambda v: (0, v)),
        compiler_params=pltpu.CompilerParams(dimension_semantics=("parallel",)),
    )(w8, emb_table)

    # Stage 2: per-bag sum of gathered scores + bias on the scalar unit.  Adequate while
    # B*S and V are modest; for GloVe-scale V the (V,) SMEM score vector no longer fits and
    # this gather should move to a VMEM-resident, bag-tiled vectorized gather.
    idx_flat = input_words.reshape(B * S).astype(jnp.int32)
    bias = fc1_b.astype(jnp.float32).reshape(1)

    out = pl.pallas_call(
        _bag_sum_kernel,
        out_shape=jax.ShapeDtypeStruct((B,), jnp.float32),
        in_specs=[
            pl.BlockSpec(memory_space=pltpu.MemorySpace.SMEM),
            pl.BlockSpec(memory_space=pltpu.MemorySpace.SMEM),
            pl.BlockSpec(memory_space=pltpu.MemorySpace.SMEM),
        ],
        out_specs=pl.BlockSpec(memory_space=pltpu.MemorySpace.SMEM),
    )(idx_flat, scores.reshape(V), bias)
    return out


# ----------------------------------- Public API --------------------------------------

def base_sentiment_forward(input_words, emb_table, fc1_w, fc1_b, *, vocab_tile=2048):
    """input_words: (B, S) int ids; emb_table: (V, D); fc1_w: (1, D); fc1_b: (1,).

    vocab_tile (path B only): table rows per stage-1 grid step.  2048 (~3 MB f32 at D=300)
    is a safe, near-roofline default on v5e/v6e/v7x; push to 4096 on v7x, keep <= 2048 on
    v5e (16 MiB scoped-VMEM default with double-buffered input tiles).
    """
    B, S = input_words.shape
    V, D = emb_table.shape
    assert fc1_w.shape[-1] == D and fc1_b.shape == (1,)

    if B * S < V:
        out = _forward_row_gather(input_words, emb_table, fc1_w, fc1_b)
    else:
        out = _forward_vocab_score(input_words, emb_table, fc1_w, fc1_b, vocab_tile)

    # torch .squeeze(): (B, 1) -> (B,) for B > 1, 0-d scalar for B == 1.
    return out[0] if B == 1 else out


if __name__ == "__main__":
    D = 300  # fixed by Linear(300, 1)
    key = jax.random.PRNGKey(0)

    def make_case(k, B, S, V):
        k_emb, k_idx, k_w, k_b = jax.random.split(k, 4)
        emb_table = jax.random.normal(k_emb, (V, D), dtype=jnp.float32)
        bound = 1.0 / (D ** 0.5)
        fc1_w = jax.random.uniform(k_w, (1, D), minval=-bound, maxval=bound, dtype=jnp.float32)
        fc1_b = jax.random.uniform(k_b, (1,), minval=-bound, maxval=bound, dtype=jnp.float32)
        ids = jax.random.randint(k_idx, (B, S), 0, V, dtype=jnp.int32)
        return ids, emb_table, fc1_w, fc1_b

    def reference(ids, emb_table, fc1_w, fc1_b):
        emb = jnp.mean(emb_table[ids].astype(jnp.float32), axis=1)               # (B, D)
        return jnp.sum(emb * fc1_w.astype(jnp.float32), axis=-1) + fc1_b.astype(jnp.float32)[0]

    k1, k2 = jax.random.split(key)

    # Case 1: B*S < V -> direct row-gather path (the common small-batch regime).
    ids, emb, w, b = make_case(k1, B=2, S=8, V=64)
    out = jax.block_until_ready(base_sentiment_forward(ids, emb, w, b))
    ref = reference(ids, emb, w, b)
    assert out.shape == (2,), out.shape
    assert jnp.allclose(out, ref, atol=1e-4, rtol=1e-4), (out, ref)

    # Case 2: B*S >= V -> vocab-scoring path (multi-tile grid incl. a partial last tile).
    ids, emb, w, b = make_case(k2, B=4, S=64, V=192)
    out = jax.block_until_ready(base_sentiment_forward(ids, emb, w, b, vocab_tile=128))
    ref = reference(ids, emb, w, b)
    assert out.shape == (4,), out.shape
    assert jnp.allclose(out, ref, atol=1e-4, rtol=1e-4), (out, ref)

    print("KERNEL_OK")
</pallas_src>

<mosaic_0001>
module attributes {stable_mosaic.version = 11 : i64} {
  func.func @_gather_bag_kernel(%arg0: i32, %arg1: i32, %arg2: memref<16xi32, #tpu.memory_space<smem>>, %arg3: memref<1x1x300xf32, #tpu.memory_space<vmem>>, %arg4: memref<2x300xf32, #tpu.memory_space<vmem>>, %arg5: memref<1x1x128xf32, #tpu.memory_space<vmem>>, %arg6: memref<1x300xf32, #tpu.memory_space<vmem>>) attributes {dimension_semantics = [#tpu.dimension_semantics<parallel>, #tpu.dimension_semantics<arbitrary>], iteration_bounds = array<i64: 2, 8>, scalar_prefetch = 1 : i64, scratch_operands = 1 : i64, tpu.core_type = #tpu.core_type<tc>, window_params = [{transform_indices = @transform_0, window_bounds = array<i64: 1, 1, 300>}, {pipeline_mode = #tpu.pipeline_mode<synchronous>, transform_indices = @transform_1, window_bounds = array<i64: 2, 300>}, {transform_indices = @transform_2, window_bounds = array<i64: 1, 1, 128>}]} {
    %c0_i32 = arith.constant 0 : i32
    %0 = arith.cmpi eq, %arg1, %c0_i32 : i32
    %1 = arith.extui %0 : i1 to i32
    %c0_i32_0 = arith.constant 0 : i32
    %2 = arith.cmpi ne, %1, %c0_i32_0 : i32
    scf.if %2 {
      %cst = arith.constant 0.000000e+00 : f32
      %11 = vector.broadcast %cst : f32 to vector<1x300xf32>
      %c0_8 = arith.constant 0 : index
      %c0_9 = arith.constant 0 : index
      %12 = vector.load %arg6[%c0_8, %c0_9] : memref<1x300xf32, #tpu.memory_space<vmem>>, vector<1x300xf32>
      tpu.vector_store %arg6[%c0_8, %c0_9], %11 {strides = array<i32>} : memref<1x300xf32, #tpu.memory_space<vmem>>, vector<1x300xf32>,
    } else {
    }
    %c0 = arith.constant 0 : index
    %c0_1 = arith.constant 0 : index
    %3 = vector.load %arg6[%c0, %c0_1] : memref<1x300xf32, #tpu.memory_space<vmem>>, vector<1x300xf32>
    %c0_2 = arith.constant 0 : index
    %c0_3 = arith.constant 0 : index
    %c0_4 = arith.constant 0 : index
    %4 = vector.load %arg3[%c0_2, %c0_3, %c0_4] : memref<1x1x300xf32, #tpu.memory_space<vmem>>, vector<1x1x300xf32>
    %5 = vector.shape_cast %4 : vector<1x1x300xf32> to vector<1x300xf32>
    %6 = arith.addf %3, %5 : vector<1x300xf32>
    %c0_5 = arith.constant 0 : index
    %c0_6 = arith.constant 0 : index
    %7 = vector.load %arg6[%c0_5, %c0_6] : memref<1x300xf32, #tpu.memory_space<vmem>>, vector<1x300xf32>
    tpu.vector_store %arg6[%c0_5, %c0_6], %6 {strides = array<i32>} : memref<1x300xf32, #tpu.memory_space<vmem>>, vector<1x300xf32>,
    %c7_i32 = arith.constant 7 : i32
    %8 = arith.cmpi eq, %arg1, %c7_i32 : i32
    %9 = arith.extui %8 : i1 to i32
    %c0_i32_7 = arith.constant 0 : i32
    %10 = arith.cmpi ne, %9, %c0_i32_7 : i32
    scf.if %10 {
      %c0_8 = arith.constant 0 : index
      %c0_9 = arith.constant 0 : index
      %11 = vector.load %arg6[%c0_8, %c0_9] : memref<1x300xf32, #tpu.memory_space<vmem>>, vector<1x300xf32>
      %c0_10 = arith.constant 0 : index
      %c0_11 = arith.constant 0 : index
      %12 = vector.load %arg4[%c0_10, %c0_11] : memref<2x300xf32, #tpu.memory_space<vmem>>, vector<1x300xf32>
      %13 = arith.mulf %11, %12 : vector<1x300xf32>
      %cst = arith.constant dense<0.000000e+00> : vector<1xf32>
      %14 = vector.multi_reduction <add>, %13, %cst [1] : vector<1x300xf32> to vector<1xf32>
      %15 = vector.shape_cast %14 : vector<1xf32> to vector<1x1xf32>
      %c1 = arith.constant 1 : index
      %c0_12 = arith.constant 0 : index
      %16 = vector.load %arg4[%c1, %c0_12] : memref<2x300xf32, #tpu.memory_space<vmem>>, vector<1x1xf32>
      %17 = arith.addf %15, %16 : vector<1x1xf32>
      %18 = vector.shape_cast %17 : vector<1x1xf32> to vector<1x1x1xf32>
      %19 = vector.shape_cast %18 : vector<1x1x1xf32> to vector<1x1x1xf32>
      %20 = vector.broadcast %19 : vector<1x1x1xf32> to vector<1x1x128xf32>
      %c0_13 = arith.constant 0 : index
      %c0_14 = arith.constant 0 : index
      %c0_15 = arith.constant 0 : index
      %21 = vector.load %arg5[%c0_13, %c0_14, %c0_15] : memref<1x1x128xf32, #tpu.memory_space<vmem>>, vector<1x1x128xf32>
      tpu.vector_store %arg5[%c0_13, %c0_14, %c0_15], %20 {strides = array<i32>} : memref<1x1x128xf32, #tpu.memory_space<vmem>>, vector<1x1x128xf32>,
    } else {
    }
    return
  }
  func.func @transform_0(%arg0: i32, %arg1: i32, %arg2: memref<16xi32, #tpu.memory_space<smem>>) -> (i32, i32, i32) {
    %c8_i32 = arith.constant 8 : i32
    %0 = arith.muli %arg0, %c8_i32 : i32
    %1 = arith.addi %0, %arg1 : i32
    %2 = arith.index_cast %1 : i32 to index
    %3 = memref.load %arg2[%2] : memref<16xi32, #tpu.memory_space<smem>>
    %c0_i32 = arith.constant 0 : i32
    %c0_i32_0 = arith.constant 0 : i32
    %c0_i32_1 = arith.constant 0 : i32
    return %3, %c0_i32, %c0_i32_0 : i32, i32, i32
  }
  func.func @transform_1(%arg0: i32, %arg1: i32, %arg2: memref<16xi32, #tpu.memory_space<smem>>) -> (i32, i32) {
    %c0_i32 = arith.constant 0 : i32
    %c0_i32_0 = arith.constant 0 : i32
    %c0_i32_1 = arith.constant 0 : i32
    return %c0_i32, %c0_i32_0 : i32, i32
  }
  func.func @transform_2(%arg0: i32, %arg1: i32, %arg2: memref<16xi32, #tpu.memory_space<smem>>) -> (i32, i32, i32) {
    %c0_i32 = arith.constant 0 : i32
    %c0_i32_0 = arith.constant 0 : i32
    %c0_i32_1 = arith.constant 0 : i32
    return %arg0, %c0_i32, %c0_i32_0 : i32, i32, i32
  }
}

</mosaic_0001>

<llo_original>
// kernel: tpu_custom_call.1
$region0: #{tpu_custom_call.1}
  #allocation0 [shape = 'u32[]', space=smem, size = 0x4, offset = 0x4, fixed_abs, tag = 'smem constant byte address 0x4 - core index']
  #allocation1 [shape = 'u32[144,128]{1,0:T(1,128)}', space=vmem, size = 0x12000, scoped, tag = 'internal scratch']
  #allocation2 [shape = 'f32[1,300]{1,0:T(1,128)}', space=vmem, size = 0x600, scoped, tag = 'scratch operand']
  #allocation3 [shape = 's32[1]{0}', space=sflag, size = 0x4, scoped, tag = 'scoped memory for tpu_custom_call.1']
  #allocation4 [shape = 'u8[512]{0}', space=smem, size = 0x200, scoped, tag = 'prefetched SMEM operand 0']
  %s0 = inlined_call_operand.hbm [shape: s32[16], index: 0, kind: input, shape index: {}]
  %s1 = inlined_call_operand.hbm [shape: f32[64,1,300], index: 1, kind: input, shape index: {}]
  %s2 = inlined_call_operand.hbm [shape: f32[2,300], index: 2, kind: input, shape index: {}]
  %s3 = inlined_call_operand.hbm [shape: f32[2,1,128], index: 3, kind: output, shape index: {}]
  %s4 = sld [smem:[#allocation0]]
  $region57: #{tpu_custom_call.1} parent=0
    _
  %s6 = ssub.s32 1, %s4
  %s7 = scalar_select 0, %s6, %s4
  %9 = dma.hbm_to_smem %s0, 16, [#allocation4], [#allocation3]
  %10 = dma.done [#allocation3], 16
  %11 = sfence
  $region1: #{tpu_custom_call.1} parent=0
    #allocation5 [shape = 'u8[3072]{0}', space=vmem, size = 0xc00, scoped, tag = 'input window, operand 1']
    #allocation6 [shape = 's32[2]{0}', space=sflag, size = 0x8, scoped, tag = 'scoped memory for tpu_custom_call.1']
    #allocation7 [shape = 's32[2]{0}', space=sflag, size = 0x8, scoped, tag = 'scoped memory for tpu_custom_call.1']
    #allocation8 [shape = 'u8[3072]{0}', space=vmem, size = 0xc00, scoped, tag = 'input window, operand 2, single buffered']
    #allocation9 [shape = 's32[1]{0}', space=sflag, size = 0x4, scoped, tag = 'scoped memory for tpu_custom_call.1']
    #allocation10 [shape = 'u8[1024]{0}', space=vmem, size = 0x400, scoped, tag = 'output window, operand 0']
    %12 = vsyncpa [#allocation6], 0
    %s13 = scalar_lea.sflag [#allocation6], 1
    %14 = vsyncpa %s13, 0
    %15 = vsyncpa [#allocation9], 0
    %16 = vsyncpa [#allocation7], 0
    %s17 = scalar_lea.sflag [#allocation7], 1
    %18 = vsyncpa %s17, 0
    loop: start=0, step=1, limit=18
    $region2: #{tpu_custom_call.1} parent=1 // loop_pre_header
      _
    $region3: #{tpu_custom_call.1} parent=1 // loop_header
      %s20 = sphi 0, %s24
      %p21 = scmp.ge.s32.totalorder %s20, 18
      %s27 = sphi 0, %s39
      %s28 = sphi 0, %s35
      %s29 = sphi 0, %s27
      %s30 = sphi 0, %s28
      %s31 = sphi 0, %s29
      %s32 = sphi 0, %s30
      %s48 = sphi 0, %s50
      %s51 = sphi 0, %s48
      %s52 = sphi 0, %s51
      %s68 = sphi 0, %s52
      %s72 = sphi 0, %s72
      %s74 = sphi 0, %s72
      %s75 = sphi 0, %s74
      %s89 = sphi 0, %s75
      %s95 = sphi 0, %s97
      %s98 = sphi 0, %s95
      %s99 = sphi 0, %s98
      %s115 = sphi 0, %s99
    $region4: #{tpu_custom_call.1} parent=1 // loop_header_branch
      %23 = sbr.rel (%p21) target = $region8
    $region5: #{tpu_custom_call.1} parent=1 // loop_body
      %s25 = ssub.s32 %s20, 1
      %s26 = ssub.s32 %s20, 2
      %s33 = sadd.s32 1, %s28
      %p34 = scmp.ge.s32.totalorder %s33, 8
      %s35 = scalar_select %p34, 0, %s33
      %s36 = sadd.s32 1, %s27
      %s37 = scalar_select %p34, %s36, %s27
      %p38 = scmp.ge.s32.totalorder %s37, 2
      %s39 = scalar_select %p38, 0, %s37
      %s40 = smul.u32 %s27, 8
      %s41 = sadd.s32 %s40, %s28
      %s42 = sld [smem:[#allocation4 + %s41]]
      %s43 = smul.u32 %s39, 8
      %s44 = sadd.s32 %s43, %s35
      %s45 = sld [smem:[#allocation4 + %s44]]
      %s46 = ssub.s32 %s42, %s45
      %p47 = scmp.eq.s32.totalorder %s46, 0
      %s49 = sadd.s32 %s48, 1
      %s50 = scalar_select %p47, %s48, %s49
      %p53 = pneg %p47
      %p54 = scmp.eq.s32.totalorder %s20, 15
      %p55 = por %p53, %p54
      %p56 = scmp.ne.s32.totalorder %s48, %s51
      %p57 = scmp.eq.s32.totalorder %s20, 0
      %p58 = por %p56, %p57
      %p59 = scmp.ne.s32.totalorder %s48, %s51
      %p60 = scmp.eq.s32.totalorder %s25, 15
      %p61 = por %p59, %p60
      %p62 = scmp.ne.s32.totalorder %s51, %s52
      %p63 = scmp.eq.s32.totalorder %s25, 0
      %p64 = por %p62, %p63
      %p65 = scmp.ne.s32.totalorder %s51, %s52
      %p66 = scmp.eq.s32.totalorder %s26, 15
      %p67 = por %p65, %p66
      %p69 = scmp.ne.s32.totalorder %s52, %s68
      %p70 = scmp.eq.s32.totalorder %s26, 0
      %p71 = por %p69, %p70
      %s73 = sadd.s32 %s72, 1
      %p76 = scmp.eq.s32.totalorder %s20, 15
      %p77 = scmp.ne.s32.totalorder %s72, %s74
      %p78 = scmp.eq.s32.totalorder %s20, 0
      %p79 = por %p77, %p78
      %p80 = scmp.ne.s32.totalorder %s72, %s74
      %p81 = scmp.eq.s32.totalorder %s25, 15
      %p82 = por %p80, %p81
      %p83 = scmp.ne.s32.totalorder %s74, %s75
      %p84 = scmp.eq.s32.totalorder %s25, 0
      %p85 = por %p83, %p84
      %p86 = scmp.ne.s32.totalorder %s74, %s75
      %p87 = scmp.eq.s32.totalorder %s26, 15
      %p88 = por %p86, %p87
      %p90 = scmp.ne.s32.totalorder %s75, %s89
      %p91 = scmp.eq.s32.totalorder %s26, 0
      %p92 = por %p90, %p91
      %s93 = ssub.s32 %s27, %s39
      %p94 = scmp.eq.s32.totalorder %s93, 0
      %s96 = sadd.s32 %s95, 1
      %s97 = scalar_select %p94, %s95, %s96
      %p100 = pneg %p94
      %p101 = scmp.eq.s32.totalorder %s20, 15
      %p102 = por %p100, %p101
      %p103 = scmp.ne.s32.totalorder %s95, %s98
      %p104 = scmp.eq.s32.totalorder %s20, 0
      %p105 = por %p103, %p104
      %p106 = scmp.ne.s32.totalorder %s95, %s98
      %p107 = scmp.eq.s32.totalorder %s25, 15
      %p108 = por %p106, %p107
      %p109 = scmp.ne.s32.totalorder %s98, %s99
      %p110 = scmp.eq.s32.totalorder %s25, 0
      %p111 = por %p109, %p110
      %p112 = scmp.ne.s32.totalorder %s98, %s99
      %p113 = scmp.eq.s32.totalorder %s26, 15
      %p114 = por %p112, %p113
      %p116 = scmp.ne.s32.totalorder %s99, %s115
      %p117 = scmp.eq.s32.totalorder %s26, 0
      %p118 = por %p116, %p117
      %p119 = scmp.le.s32.totalorder 1, %s20
      %p120 = scmp.lt.s32.totalorder %s20, 17
      %p121 = pnand %p119, %p120
      %p122 = pneg %p121
      // Predicated region
      $region9: #{tpu_custom_call.1} parent=5 // pred_check
        _
      $region10: #{tpu_custom_call.1} parent=5 // pred_check_branch
        %124 = sbr.rel (%p121) target = $region12
      $region11: #{tpu_custom_call.1} parent=5 // pred_region
        %s125 = ssub.s32 %s20, 1
        // Predicated region
        $region13: #{tpu_custom_call.1} parent=11 // pred_check
          %p126 = pneg %p85
        $region14: #{tpu_custom_call.1} parent=11 // pred_check_branch
          %128 = sbr.rel (%p126) target = $region16
        $region15: #{tpu_custom_call.1} parent=11 // pred_region
          %s130 = ssub.s32 96, 96
          %131 = vsyncadd [#allocation9], %s130
          %s133 = sshll.u32 [#allocation8], 4
          %s134 = int_to_ptr.vmem [resolvable:$true] %s133
          %136 = dma.hbm_to_vmem [thread:$0]  %s2, 96, %s134, [#allocation9]
        $region16: #{tpu_custom_call.1} parent=11 // pred_fallthru
          _
      $region12: #{tpu_custom_call.1} parent=5 // pred_fallthru
        _
      %p137 = scmp.lt.s32.totalorder %s20, 16
      // Predicated region
      $region17: #{tpu_custom_call.1} parent=5 // pred_check
        %p138 = pneg %p137
      $region18: #{tpu_custom_call.1} parent=5 // pred_check_branch
        %140 = sbr.rel (%p138) target = $region20
      $region19: #{tpu_custom_call.1} parent=5 // pred_region
        // Predicated region
        $region21: #{tpu_custom_call.1} parent=19 // pred_check
          %p141 = pneg %p58
        $region22: #{tpu_custom_call.1} parent=19 // pred_check_branch
          %143 = sbr.rel (%p141) target = $region24
        $region23: #{tpu_custom_call.1} parent=19 // pred_region
          %s144 = sand.u32 %s48, 1
          %s145 = scalar_lea.sflag [#allocation6], %s144
          %s146 = sand.u32 %s48, 1
          %s147 = smul.addr %s146, 3
          %s148 = scalar_lea.vmem [#allocation5], %s147
          %s149 = smul.u32 %s27, 8
          %s150 = sadd.s32 %s149, %s28
          %s151 = sld [smem:[#allocation4 + %s150]]
          %s153 = ssub.s32 48, 48
          %154 = vsyncadd %s145, %s153
          %s155 = smul.addr %s151, 3
          %s156 = smul.addr %s155, 16
          %s157 = scalar_lea.hbm %s1, %s156
          %s159 = sshll.u32 %s148, 4
          %s160 = int_to_ptr.vmem [resolvable:$true] %s159
          %162 = dma.hbm_to_vmem [thread:$0]  %s157, 48, %s160, %s145
        $region24: #{tpu_custom_call.1} parent=19 // pred_fallthru
          _
      $region20: #{tpu_custom_call.1} parent=5 // pred_fallthru
        _
      %p163 = scmp.le.s32.totalorder 1, %s20
      %p164 = scmp.lt.s32.totalorder %s20, 17
      %p165 = pnand %p163, %p164
      %p166 = pneg %p165
      // Predicated region
      $region25: #{tpu_custom_call.1} parent=5 // pred_check
        _
      $region26: #{tpu_custom_call.1} parent=5 // pred_check_branch
        %168 = sbr.rel (%p165) target = $region28
      $region27: #{tpu_custom_call.1} parent=5 // pred_region
        %s169 = ssub.s32 %s20, 1
        %s170 = sand.u32 %s51, 1
        %s171 = scalar_lea.sflag [#allocation6], %s170
        %s172 = sand.u32 %s51, 1
        %s173 = smul.addr %s172, 3
        %s174 = scalar_lea.vmem [#allocation5], %s173
        // Predicated region
        $region29: #{tpu_custom_call.1} parent=27 // pred_check
          %p175 = pneg %p64
        $region30: #{tpu_custom_call.1} parent=27 // pred_check_branch
          %177 = sbr.rel (%p175) target = $region32
        $region31: #{tpu_custom_call.1} parent=27 // pred_region
          %178 = dma.done %s171, 48
        $region32: #{tpu_custom_call.1} parent=27 // pred_fallthru
          _
        // Predicated region
        $region33: #{tpu_custom_call.1} parent=27 // pred_check
          %p179 = pneg %p85
        $region34: #{tpu_custom_call.1} parent=27 // pred_check_branch
          %181 = sbr.rel (%p179) target = $region36
        $region35: #{tpu_custom_call.1} parent=27 // pred_region
          %182 = dma.done [#allocation9], 96
        $region36: #{tpu_custom_call.1} parent=27 // pred_fallthru
          _
        %s183 = sand.u32 %s51, 1
        %s184 = scalar_lea.sflag [#allocation6], %s183
        %s185 = sand.u32 %s51, 1
        %s186 = smul.addr %s185, 3
        %s187 = scalar_lea.vmem [#allocation5], %s186
        %p188 = pneg %p64
        %p189 = pneg %p61
        %p190 = pneg %p85
        %p191 = pneg %p82
        %p192 = pneg %p111
        %p193 = pneg %p108
        %s194 = sand.u32 %s98, 1
        %s195 = scalar_lea.sflag [#allocation7], %s194
        %s196 = sand.u32 %s98, 1
        %s197 = scalar_lea.vmem [#allocation10], %s196
        %s198 = smul.u32 %s29, 8
        %s199 = sadd.s32 %s198, %s30
        %s200 = sld [smem:[#allocation4 + %s199]]
        %p201 = scmp.eq.s32.totalorder %s30, 0
        // Predicated region
        $region37: #{tpu_custom_call.1} parent=27 // pred_check
          %p202 = pneg %p201
        $region38: #{tpu_custom_call.1} parent=27 // pred_check_branch
          %204 = sbr.rel (%p202) target = $region40
        $region39: #{tpu_custom_call.1} parent=27 // pred_region
          %v205 = vlaneseq
          %vm206 = vcmp.ge.s32.totalorder %v205, 0
          %vm207 = vcmp.lt.s32.totalorder %v205, 300
          %vm208 = vmand %vm206, %vm207
          %209 = vst.msk [vmem:[#allocation2] sm:$0x7] %vm208, 0.0
        $region40: #{tpu_custom_call.1} parent=27 // pred_fallthru
          _
        %v210 = vld [vmem:[#allocation2] sm:$0x7]
        %v211 = vld [vmem:[%s174] sm:$0x7]
        %v212 = vadd.f32 %v210, %v211
        %v213 = vlaneseq
        %vm214 = vcmp.ge.s32.totalorder %v213, 0
        %vm215 = vcmp.lt.s32.totalorder %v213, 300
        %vm216 = vmand %vm214, %vm215
        %217 = vst.msk [vmem:[#allocation2] sm:$0x7] %vm216, %v212
        %p218 = scmp.eq.s32.totalorder %s30, 7
        // Predicated region
        $region41: #{tpu_custom_call.1} parent=27 // pred_check
          %p219 = pneg %p218
        $region42: #{tpu_custom_call.1} parent=27 // pred_check_branch
          %221 = sbr.rel (%p219) target = $region44
        $region43: #{tpu_custom_call.1} parent=27 // pred_region
          %v222 = vld [vmem:[#allocation2] sm:$0x7]
          %v223 = vld [vmem:[#allocation8] ss:$2 sm:$0x7]
          %v224 = vmul.f32 %v222, %v223
          %v226 = vlaneseq
          %v227 = vshrl.u32 %v226, 7
          %v228 = vsub.s32 0, %v227
          %v229 = vrot.slane %v224, %v228
          %v230 = vlaneseq
          %v231 = vshrl.u32 %v230, 7
          %v232 = vsub.s32 1, %v231
          %v233 = vrot.slane %v224, %v232
          %v234 = vlaneseq
          %v235 = vshrl.u32 %v234, 7
          %v236 = vsub.s32 2, %v235
          %v237 = vrot.slane %v224, %v236
          %vm241 = vcmask 1040384
          %v242 = vsel %vm241, %v229, 0.0
          %v243 = vsel %vm241, %v233, 0.0
          %v244 = vadd.f32 %v242, %v243
          %vm245 = vcmask 352256
          %v246 = vsel %vm245, %v237, 0.0
          %v247 = vadd.f32 %v244, %v246
          %248 = vadd.xlane.f32.xlu0 %v247
          %v249 = vpop.xlane.xlu0 %248
          %v250 = vld [vmem:[#allocation8 + $0x1] sm:$0x1]
          %v251 = vadd.f32 %v249, %v250
          %253 = vset.pattern.permute.xlu0 0
          %254 = vperm.xlu0 %253, %v251
          %v255 = vpop.permute.xlu0 %254
          %257 = vst [vmem:[%s197] sm:$0x1] %v255
        $region44: #{tpu_custom_call.1} parent=27 // pred_fallthru
          _
        %s258 = sand.u32 %s98, 1
        %s259 = scalar_lea.sflag [#allocation7], %s258
        %s260 = sand.u32 %s98, 1
        %s261 = scalar_lea.vmem [#allocation10], %s260
        // Predicated region
        $region45: #{tpu_custom_call.1} parent=27 // pred_check
          %p262 = pneg %p108
        $region46: #{tpu_custom_call.1} parent=27 // pred_check_branch
          %264 = sbr.rel (%p262) target = $region48
        $region47: #{tpu_custom_call.1} parent=27 // pred_region
          %s266 = ssub.s32 16, 16
          %267 = vsyncadd %s259, %s266
          %s268 = smul.addr %s29, 16
          %s269 = scalar_lea.hbm %s3, %s268
          %s271 = sshll.u32 %s261, 4
          %s272 = int_to_ptr.vmem [resolvable:$true] %s271
          %274 = dma.vmem_to_hbm [thread:$0]  %s272, 16, %s269, %s259
        $region48: #{tpu_custom_call.1} parent=27 // pred_fallthru
          _
      $region28: #{tpu_custom_call.1} parent=5 // pred_fallthru
        _
      %p275 = scmp.le.s32.totalorder 2, %s20
      // Predicated region
      $region49: #{tpu_custom_call.1} parent=5 // pred_check
        %p276 = pneg %p275
      $region50: #{tpu_custom_call.1} parent=5 // pred_check_branch
        %278 = sbr.rel (%p276) target = $region52
      $region51: #{tpu_custom_call.1} parent=5 // pred_region
        %s279 = ssub.s32 %s20, 2
        // Predicated region
        $region53: #{tpu_custom_call.1} parent=51 // pred_check
          %p280 = pneg %p114
        $region54: #{tpu_custom_call.1} parent=51 // pred_check_branch
          %282 = sbr.rel (%p280) target = $region56
        $region55: #{tpu_custom_call.1} parent=51 // pred_region
          %s283 = sand.u32 %s99, 1
          %s284 = scalar_lea.sflag [#allocation7], %s283
          %s285 = sand.u32 %s99, 1
          %s286 = scalar_lea.vmem [#allocation10], %s285
          %287 = dma.done %s284, 16
        $region56: #{tpu_custom_call.1} parent=51 // pred_fallthru
          _
      $region52: #{tpu_custom_call.1} parent=5 // pred_fallthru
        _
    $region6: #{tpu_custom_call.1} parent=1 // loop_footer
      %s24 = sadd.s32 1, %s20
    $region7: #{tpu_custom_call.1} parent=1 // loop_footer_branch
      %19 = sbr.rel target = $region3
    $region8: #{tpu_custom_call.1} parent=1 // loop_exit
      _
    %288 = vsyncpa [#allocation6], 1
    %s289 = scalar_lea.sflag [#allocation6], 1
    %290 = vsyncpa %s289, 1
    %291 = vsyncpa [#allocation9], 1
    %292 = vsyncpa [#allocation7], 1
    %s293 = scalar_lea.sflag [#allocation7], 1
    %294 = vsyncpa %s293, 1

</llo_original>
